<compile_context>
chip_gen: v6e
topology: v6e:2x2x1
jax: 0.10.0
libtpu: 0.0.40
codegen_flags: <defaults>
</compile_context>

<pallas_src>
import numpy as np
import jax
import jax.numpy as jnp
from jax.experimental import pallas as pl
from jax.experimental.pallas import tpu as pltpu

EXIT = 1.0
ATTACKER_VISITED = 0.1
ATTACKER_CURRENT = 0.5


# ----------------------------- Pallas kernel --------------------------------
def state_encoder_kernel(x_ref, w1_ref, b1_ref, w2_ref, b2_ref, wf_ref, bf_ref, out_ref):
    f32, bf16 = jnp.float32, jnp.bfloat16
    relu = lambda v: jnp.maximum(v, 0.0)

    # layer 1: fused block-diag (h | p | t) — x is already bf16, accumulate in f32
    a1 = relu(jnp.dot(x_ref[...], w1_ref[...], preferred_element_type=f32) + b1_ref[...])

    # layer 2: fused block-diag (h | p | t).  (Original module applies ReLU twice to the
    # h-branch output; ReLU is idempotent so a single ReLU here is equivalent.)
    a2 = relu(jnp.dot(a1.astype(bf16), w2_ref[...], preferred_element_type=f32) + b2_ref[...])

    # fc1 over concat(h, p, t): single matmul, output zero-padded to 128 lanes
    out = jnp.dot(a2.astype(bf16), wf_ref[...], preferred_element_type=f32) + bf_ref[...]
    out_ref[...] = out.astype(out_ref.dtype)


def state_encoder_pallas(x, packed, relevant_v_size, tile_b=128):
    """x: (B, n_in + emb*num_def + 1) float32. Returns (B, relevant_v_size) float32."""
    B, K = x.shape
    x = x.astype(jnp.bfloat16)                      # halve activation DMA bytes
    Bp = max(tile_b, pl.cdiv(B, tile_b) * tile_b)
    if Bp != B:
        x = jnp.pad(x, ((0, Bp - B), (0, 0)))
    n_out_pad = packed["BF"].shape[-1]              # 128 (lane-dense padded output)

    def const(shape):
        return pl.BlockSpec(shape, lambda i: (0, 0))

    out = pl.pallas_call(
        state_encoder_kernel,
        out_shape=jax.ShapeDtypeStruct((Bp, n_out_pad), jnp.float32),
        grid_spec=pltpu.PrefetchScalarGridSpec(
            num_scalar_prefetch=0,
            grid=(Bp // tile_b,),
            in_specs=[
                pl.BlockSpec((tile_b, K), lambda i: (i, 0)),   # activations: tiled over batch
                const(packed["W1"].shape), const(packed["B1"].shape),
                const(packed["W2"].shape), const(packed["B2"].shape),
                const(packed["WF"].shape), const(packed["BF"].shape),
            ],
            out_specs=pl.BlockSpec((tile_b, n_out_pad), lambda i: (i, 0)),
        ),
        compiler_params=pltpu.CompilerParams(dimension_semantics=("parallel",)),
    )(x, packed["W1"], packed["B1"], packed["W2"], packed["B2"],
      packed["WF"], packed["BF"])
    return out[:B, :relevant_v_size]


# ----------------------------- parameters ------------------------------------
def make_params(key, num_nodes, embedding_size, hidden_size, relevant_v_size, num_defender):
    n_in = num_nodes + 1  # SeqEncoder.num_nodes = in_dim + 1
    ks = jax.random.split(key, 16)

    def linear(kw, kb, fan_in, fan_out):
        scale = 1.0 / np.sqrt(fan_in)
        w = jax.random.uniform(kw, (fan_in, fan_out), jnp.float32, -scale, scale)
        b = jax.random.uniform(kb, (1, fan_out), jnp.float32, -scale, scale)
        return w, b

    ws1, bs1 = linear(ks[0], ks[1], n_in, hidden_size)
    ws2, bs2 = linear(ks[2], ks[3], hidden_size, hidden_size)
    wt1, bt1 = linear(ks[4], ks[5], 1, 8)
    wt2, bt2 = linear(ks[6], ks[7], 8, 8)
    wp1, bp1 = linear(ks[8], ks[9], embedding_size * num_defender, hidden_size)
    wp2, bp2 = linear(ks[10], ks[11], hidden_size, hidden_size)
    wf1, bf1 = linear(ks[12], ks[13], hidden_size * 2 + 8, relevant_v_size)

    # embedding_p: (num_nodes+1, embedding_size), padding_idx=0 row is zero
    emb = jax.random.normal(ks[14], (num_nodes + 1, embedding_size), jnp.float32)
    emb = emb.at[0].set(0.0)

    return dict(ws1=ws1, bs1=bs1, ws2=ws2, bs2=bs2,
                wt1=wt1, bt1=bt1, wt2=wt2, bt2=bt2,
                wp1=wp1, bp1=bp1, wp2=wp2, bp2=bp2,
                wf1=wf1, bf1=bf1, embedding_p=emb)


def pack_params(p, num_nodes, embedding_size, hidden_size, relevant_v_size,
                num_defender, out_pad=128):
    """Build block-diagonal bf16 weight slabs + concatenated f32 bias slabs."""
    n_in = num_nodes + 1
    pe = embedding_size * num_defender
    k1 = n_in + pe + 1           # concat input width: nfeat | pemb | norm_t
    h2 = 2 * hidden_size + 8     # concat hidden width: h | p | t

    w1 = np.zeros((k1, h2), np.float32)
    w1[0:n_in, 0:hidden_size] = np.asarray(p["ws1"])
    w1[n_in:n_in + pe, hidden_size:2 * hidden_size] = np.asarray(p["wp1"])
    w1[n_in + pe:, 2 * hidden_size:] = np.asarray(p["wt1"])
    b1 = np.concatenate([np.asarray(p["bs1"]), np.asarray(p["bp1"]),
                         np.asarray(p["bt1"])], axis=1)

    w2 = np.zeros((h2, h2), np.float32)
    w2[0:hidden_size, 0:hidden_size] = np.asarray(p["ws2"])
    w2[hidden_size:2 * hidden_size, hidden_size:2 * hidden_size] = np.asarray(p["wp2"])
    w2[2 * hidden_size:, 2 * hidden_size:] = np.asarray(p["wt2"])
    b2 = np.concatenate([np.asarray(p["bs2"]), np.asarray(p["bp2"]),
                         np.asarray(p["bt2"])], axis=1)

    wf = np.zeros((h2, out_pad), np.float32)     # zero-pad fc1 output to 128 lanes
    wf[:, :relevant_v_size] = np.asarray(p["wf1"])
    bf = np.zeros((1, out_pad), np.float32)
    bf[:, :relevant_v_size] = np.asarray(p["bf1"])

    return dict(
        W1=jnp.asarray(w1, jnp.bfloat16), B1=jnp.asarray(b1, jnp.float32),
        W2=jnp.asarray(w2, jnp.bfloat16), B2=jnp.asarray(b2, jnp.float32),
        WF=jnp.asarray(wf, jnp.bfloat16), BF=jnp.asarray(bf, jnp.float32),
    )


# ----------------------------- host glue --------------------------------------
def build_inputs(states, num_nodes, time_horizon, exits, params):
    """Reproduces the PyTorch glue: n_feature scatter, norm_t, position embedding,
    plus the fused concat input for the kernel."""
    attacker_history, position = zip(*states)
    B = len(states)
    n_in = num_nodes + 1

    nfeat = np.zeros((B, n_in), dtype=np.float32)
    for i in range(B):
        hist = np.asarray(attacker_history[i], dtype=np.int64)
        nfeat[i][np.asarray(exits, dtype=np.int64)] = EXIT
        nfeat[i][hist[:-1]] = ATTACKER_VISITED
        nfeat[i][hist[-1]] = ATTACKER_CURRENT

    norm_t = np.array([[(len(h) - 1) / time_horizon] for h in attacker_history],
                      dtype=np.float32)

    pos = jnp.asarray(np.asarray(position, dtype=np.int32))          # (B, num_defender)
    p_emb = jnp.take(params["embedding_p"], pos, axis=0)             # (B, D, E)
    p_emb_flat = p_emb.reshape(B, -1)                                # flatten(start_dim=1)

    nfeat = jnp.asarray(nfeat)
    norm_t = jnp.asarray(norm_t)
    x = jnp.concatenate([nfeat, p_emb_flat, norm_t], axis=1)         # (B, n_in+E*D+1)
    return nfeat, norm_t, p_emb_flat, x


# ----------------------------- references -------------------------------------
def reference_forward_f32(nfeat, norm_t, pemb_flat, p):
    """Module-faithful f32 forward (mirrors the PyTorch StateEncoder, mlp branch)."""
    relu = lambda v: jnp.maximum(v, 0.0)
    h = relu(nfeat @ p["ws1"] + p["bs1"])
    h = relu(h @ p["ws2"] + p["bs2"])
    h = relu(h)
    t = relu(norm_t @ p["wt1"] + p["bt1"])
    t = relu(t @ p["wt2"] + p["bt2"])
    pp = relu(pemb_flat @ p["wp1"] + p["bp1"])
    pp = relu(pp @ p["wp2"] + p["bp2"])
    feat = jnp.concatenate([h, pp, t], axis=1)
    return feat @ p["wf1"] + p["bf1"]


def reference_forward_bf16(x, packed, relevant_v_size):
    """Same math as the kernel (bf16 MXU operands, f32 accumulate) in plain JAX."""
    f32, bf16 = jnp.float32, jnp.bfloat16
    relu = lambda v: jnp.maximum(v, 0.0)
    a1 = relu(jnp.dot(x.astype(bf16), packed["W1"], preferred_element_type=f32) + packed["B1"])
    a2 = relu(jnp.dot(a1.astype(bf16), packed["W2"], preferred_element_type=f32) + packed["B2"])
    out = jnp.dot(a2.astype(bf16), packed["WF"], preferred_element_type=f32) + packed["BF"]
    return out[:, :relevant_v_size]


# ----------------------------- main -------------------------------------------
if __name__ == "__main__":
    num_nodes = 16
    time_horizon = 8
    embedding_size = 16
    hidden_size = 32
    relevant_v_size = 64
    num_defender = 2
    exits = [3, 7, 12]

    key = jax.random.PRNGKey(0)
    params = make_params(key, num_nodes, embedding_size, hidden_size,
                         relevant_v_size, num_defender)
    packed = pack_params(params, num_nodes, embedding_size, hidden_size,
                         relevant_v_size, num_defender)

    # deterministic batch of states: (attacker_history, defender_positions)
    rng = np.random.default_rng(0)
    B = 200                                  # non-multiple of tile to exercise padding
    states = []
    for _ in range(B):
        hlen = int(rng.integers(1, time_horizon + 1))
        hist = rng.integers(1, num_nodes + 1, size=hlen).tolist()
        pos = tuple(int(v) for v in rng.integers(1, num_nodes + 1, size=num_defender))
        states.append((hist, pos))

    nfeat, norm_t, pemb_flat, x = build_inputs(states, num_nodes, time_horizon,
                                               exits, params)

    out = state_encoder_pallas(x, packed, relevant_v_size, tile_b=128)
    out = jax.block_until_ready(out)

    # 1) tight check vs an exact bf16-mirrored reference (kernel wiring / fusion / padding)
    ref_bf16 = reference_forward_bf16(x, packed, relevant_v_size)
    np.testing.assert_allclose(np.asarray(out), np.asarray(ref_bf16),
                               rtol=2e-3, atol=2e-3)

    # 2) module-faithful f32 reference; looser tolerance accounts only for bf16 MXU operands
    ref_f32 = reference_forward_f32(nfeat, norm_t, pemb_flat, params)
    np.testing.assert_allclose(np.asarray(out), np.asarray(ref_f32),
                               rtol=5e-2, atol=5e-2)

    print("KERNEL_OK")
</pallas_src>

<mosaic_0001>
module attributes {stable_mosaic.version = 11 : i64} {
  func.func @state_encoder_kernel(%arg0: i32, %arg1: memref<128x50xbf16, #tpu.memory_space<vmem>>, %arg2: memref<50x72xbf16, #tpu.memory_space<vmem>>, %arg3: memref<1x72xf32, #tpu.memory_space<vmem>>, %arg4: memref<72x72xbf16, #tpu.memory_space<vmem>>, %arg5: memref<1x72xf32, #tpu.memory_space<vmem>>, %arg6: memref<72x128xbf16, #tpu.memory_space<vmem>>, %arg7: memref<1x128xf32, #tpu.memory_space<vmem>>, %arg8: memref<128x128xf32, #tpu.memory_space<vmem>>) attributes {dimension_semantics = [#tpu.dimension_semantics<parallel>], iteration_bounds = array<i64: 2>, scalar_prefetch = 0 : i64, scratch_operands = 0 : i64, tpu.core_type = #tpu.core_type<tc>, window_params = [{transform_indices = @transform_0, window_bounds = array<i64: 128, 50>}, {pipeline_mode = #tpu.pipeline_mode<synchronous>, transform_indices = @transform_1, window_bounds = array<i64: 50, 72>}, {pipeline_mode = #tpu.pipeline_mode<synchronous>, transform_indices = @transform_2, window_bounds = array<i64: 1, 72>}, {pipeline_mode = #tpu.pipeline_mode<synchronous>, transform_indices = @transform_3, window_bounds = array<i64: 72, 72>}, {pipeline_mode = #tpu.pipeline_mode<synchronous>, transform_indices = @transform_4, window_bounds = array<i64: 1, 72>}, {pipeline_mode = #tpu.pipeline_mode<synchronous>, transform_indices = @transform_5, window_bounds = array<i64: 72, 128>}, {pipeline_mode = #tpu.pipeline_mode<synchronous>, transform_indices = @transform_6, window_bounds = array<i64: 1, 128>}, {transform_indices = @transform_7, window_bounds = array<i64: 128, 128>}]} {
    %c0 = arith.constant 0 : index
    %c0_0 = arith.constant 0 : index
    %0 = vector.load %arg1[%c0, %c0_0] : memref<128x50xbf16, #tpu.memory_space<vmem>>, vector<128x50xbf16>
    %c0_1 = arith.constant 0 : index
    %c0_2 = arith.constant 0 : index
    %1 = vector.load %arg2[%c0_1, %c0_2] : memref<50x72xbf16, #tpu.memory_space<vmem>>, vector<50x72xbf16>
    %cst = arith.constant dense<0.000000e+00> : vector<128x72xf32>
    %2 = tpu.matmul %0, %1, %cst {dimension_numbers = #tpu.dot_dimension_numbers<[1], [0], [0], [1], [0, 0, 1, 1], [], []>} : vector<128x50xbf16>, vector<50x72xbf16>, vector<128x72xf32> -> vector<128x72xf32>
    %c0_3 = arith.constant 0 : index
    %c0_4 = arith.constant 0 : index
    %3 = vector.load %arg3[%c0_3, %c0_4] : memref<1x72xf32, #tpu.memory_space<vmem>>, vector<1x72xf32>
    %4 = vector.broadcast %3 : vector<1x72xf32> to vector<128x72xf32>
    %5 = arith.addf %2, %4 : vector<128x72xf32>
    %cst_5 = arith.constant 0.000000e+00 : f32
    %6 = vector.broadcast %cst_5 : f32 to vector<128x72xf32>
    %7 = arith.maximumf %5, %6 : vector<128x72xf32>
    %8 = arith.truncf %7 : vector<128x72xf32> to vector<128x72xbf16>
    %c0_6 = arith.constant 0 : index
    %c0_7 = arith.constant 0 : index
    %9 = vector.load %arg4[%c0_6, %c0_7] : memref<72x72xbf16, #tpu.memory_space<vmem>>, vector<72x72xbf16>
    %cst_8 = arith.constant dense<0.000000e+00> : vector<128x72xf32>
    %10 = tpu.matmul %8, %9, %cst_8 {dimension_numbers = #tpu.dot_dimension_numbers<[1], [0], [0], [1], [0, 0, 1, 1], [], []>} : vector<128x72xbf16>, vector<72x72xbf16>, vector<128x72xf32> -> vector<128x72xf32>
    %c0_9 = arith.constant 0 : index
    %c0_10 = arith.constant 0 : index
    %11 = vector.load %arg5[%c0_9, %c0_10] : memref<1x72xf32, #tpu.memory_space<vmem>>, vector<1x72xf32>
    %12 = vector.broadcast %11 : vector<1x72xf32> to vector<128x72xf32>
    %13 = arith.addf %10, %12 : vector<128x72xf32>
    %cst_11 = arith.constant 0.000000e+00 : f32
    %14 = vector.broadcast %cst_11 : f32 to vector<128x72xf32>
    %15 = arith.maximumf %13, %14 : vector<128x72xf32>
    %16 = arith.truncf %15 : vector<128x72xf32> to vector<128x72xbf16>
    %c0_12 = arith.constant 0 : index
    %c0_13 = arith.constant 0 : index
    %17 = vector.load %arg6[%c0_12, %c0_13] : memref<72x128xbf16, #tpu.memory_space<vmem>>, vector<72x128xbf16>
    %cst_14 = arith.constant dense<0.000000e+00> : vector<128x128xf32>
    %18 = tpu.matmul %16, %17, %cst_14 {dimension_numbers = #tpu.dot_dimension_numbers<[1], [0], [0], [1], [0, 0, 1, 1], [], []>} : vector<128x72xbf16>, vector<72x128xbf16>, vector<128x128xf32> -> vector<128x128xf32>
    %c0_15 = arith.constant 0 : index
    %c0_16 = arith.constant 0 : index
    %19 = vector.load %arg7[%c0_15, %c0_16] : memref<1x128xf32, #tpu.memory_space<vmem>>, vector<1x128xf32>
    %20 = vector.broadcast %19 : vector<1x128xf32> to vector<128x128xf32>
    %21 = arith.addf %18, %20 : vector<128x128xf32>
    %c0_17 = arith.constant 0 : index
    %c0_18 = arith.constant 0 : index
    %22 = vector.load %arg8[%c0_17, %c0_18] : memref<128x128xf32, #tpu.memory_space<vmem>>, vector<128x128xf32>
    tpu.vector_store %arg8[%c0_17, %c0_18], %21 {strides = array<i32>} : memref<128x128xf32, #tpu.memory_space<vmem>>, vector<128x128xf32>,
    return
  }
  func.func @transform_0(%arg0: i32) -> (i32, i32) {
    %c0_i32 = arith.constant 0 : i32
    %c0_i32_0 = arith.constant 0 : i32
    return %arg0, %c0_i32 : i32, i32
  }
  func.func @transform_1(%arg0: i32) -> (i32, i32) {
    %c0_i32 = arith.constant 0 : i32
    %c0_i32_0 = arith.constant 0 : i32
    %c0_i32_1 = arith.constant 0 : i32
    return %c0_i32, %c0_i32_0 : i32, i32
  }
  func.func @transform_2(%arg0: i32) -> (i32, i32) {
    %c0_i32 = arith.constant 0 : i32
    %c0_i32_0 = arith.constant 0 : i32
    %c0_i32_1 = arith.constant 0 : i32
    return %c0_i32, %c0_i32_0 : i32, i32
  }
  func.func @transform_3(%arg0: i32) -> (i32, i32) {
    %c0_i32 = arith.constant 0 : i32
    %c0_i32_0 = arith.constant 0 : i32
    %c0_i32_1 = arith.constant 0 : i32
    return %c0_i32, %c0_i32_0 : i32, i32
  }
  func.func @transform_4(%arg0: i32) -> (i32, i32) {
    %c0_i32 = arith.constant 0 : i32
    %c0_i32_0 = arith.constant 0 : i32
    %c0_i32_1 = arith.constant 0 : i32
    return %c0_i32, %c0_i32_0 : i32, i32
  }
  func.func @transform_5(%arg0: i32) -> (i32, i32) {
    %c0_i32 = arith.constant 0 : i32
    %c0_i32_0 = arith.constant 0 : i32
    %c0_i32_1 = arith.constant 0 : i32
    return %c0_i32, %c0_i32_0 : i32, i32
  }
  func.func @transform_6(%arg0: i32) -> (i32, i32) {
    %c0_i32 = arith.constant 0 : i32
    %c0_i32_0 = arith.constant 0 : i32
    %c0_i32_1 = arith.constant 0 : i32
    return %c0_i32, %c0_i32_0 : i32, i32
  }
  func.func @transform_7(%arg0: i32) -> (i32, i32) {
    %c0_i32 = arith.constant 0 : i32
    %c0_i32_0 = arith.constant 0 : i32
    return %arg0, %c0_i32 : i32, i32
  }
}

</mosaic_0001>

<llo_original>
// kernel: tpu_custom_call.1
$region0: #{tpu_custom_call.1}
  #allocation0 [shape = 'u32[]', space=smem, size = 0x4, offset = 0x4, fixed_abs, tag = 'smem constant byte address 0x4 - core index']
  #allocation1 [shape = 'u32[144,128]{1,0:T(1,128)}', space=vmem, size = 0x12000, scoped, tag = 'internal scratch']
  %s0 = inlined_call_operand.vmem [shape: bf16[256,50], index: 0, kind: input, shape index: {}]
  %s1 = inlined_call_operand.vmem [shape: bf16[50,72], index: 1, kind: input, shape index: {}]
  %s2 = inlined_call_operand.vmem [shape: f32[1,72], index: 2, kind: input, shape index: {}]
  %s3 = inlined_call_operand.vmem [shape: bf16[72,72], index: 3, kind: input, shape index: {}]
  %s4 = inlined_call_operand.vmem [shape: f32[1,72], index: 4, kind: input, shape index: {}]
  %s5 = inlined_call_operand.vmem [shape: bf16[72,128], index: 5, kind: input, shape index: {}]
  %s6 = inlined_call_operand.vmem [shape: f32[1,128], index: 6, kind: input, shape index: {}]
  %s7 = inlined_call_operand.hbm [shape: f32[256,128], index: 7, kind: output, shape index: {}]
  %s8 = sld [smem:[#allocation0]]
  $region61: #{tpu_custom_call.1} parent=0
    _
  %s10 = ssub.s32 1, %s8
  %s11 = scalar_select 0, %s10, %s8
  $region1: #{tpu_custom_call.1} parent=0
    #allocation2 [shape = 'u8[131072]{0}', space=vmem, size = 0x20000, scoped, tag = 'output window, operand 0']
    #allocation3 [shape = 's32[2]{0}', space=sflag, size = 0x8, scoped, tag = 'scoped memory for tpu_custom_call.1']
    %12 = vsyncpa [#allocation3], 0
    %s13 = scalar_lea.sflag [#allocation3], 1
    %14 = vsyncpa %s13, 0
    loop: start=0, step=1, limit=4
    $region2: #{tpu_custom_call.1} parent=1 // loop_pre_header
      _
    $region3: #{tpu_custom_call.1} parent=1 // loop_header
      %s16 = sphi 0, %s20
      %p17 = scmp.ge.s32.totalorder %s16, 4
      %s26 = sphi 0, %s28
      %s29 = sphi 0, %s26
      %s30 = sphi 0, %s29
      %s46 = sphi 0, %s30
      %s50 = sphi 0, %s50
      %s52 = sphi 0, %s50
      %s53 = sphi 0, %s52
      %s67 = sphi 0, %s53
      %s71 = sphi 0, %s71
      %s73 = sphi 0, %s71
      %s74 = sphi 0, %s73
      %s88 = sphi 0, %s74
      %s92 = sphi 0, %s92
      %s94 = sphi 0, %s92
      %s95 = sphi 0, %s94
      %s109 = sphi 0, %s95
      %s113 = sphi 0, %s113
      %s115 = sphi 0, %s113
      %s116 = sphi 0, %s115
      %s130 = sphi 0, %s116
      %s134 = sphi 0, %s134
      %s136 = sphi 0, %s134
      %s137 = sphi 0, %s136
      %s151 = sphi 0, %s137
      %s155 = sphi 0, %s155
      %s157 = sphi 0, %s155
      %s158 = sphi 0, %s157
      %s172 = sphi 0, %s158
      %s178 = sphi 0, %s180
      %s181 = sphi 0, %s178
      %s182 = sphi 0, %s181
      %s198 = sphi 0, %s182
    $region4: #{tpu_custom_call.1} parent=1 // loop_header_branch
      %19 = sbr.rel (%p17) target = $region8
    $region5: #{tpu_custom_call.1} parent=1 // loop_body
      %s21 = ssub.s32 %s16, 1
      %s22 = ssub.s32 %s16, 2
      %s23 = sadd.s32 %s16, 1
      %s24 = ssub.s32 %s16, %s23
      %p25 = scmp.eq.s32.totalorder %s24, 0
      %s27 = sadd.s32 %s26, 1
      %s28 = scalar_select %p25, %s26, %s27
      %p31 = pneg %p25
      %p32 = scmp.eq.s32.totalorder %s16, 1
      %p33 = por %p31, %p32
      %p34 = scmp.ne.s32.totalorder %s26, %s29
      %p35 = scmp.eq.s32.totalorder %s16, 0
      %p36 = por %p34, %p35
      %p37 = scmp.ne.s32.totalorder %s26, %s29
      %p38 = scmp.eq.s32.totalorder %s21, 1
      %p39 = por %p37, %p38
      %p40 = scmp.ne.s32.totalorder %s29, %s30
      %p41 = scmp.eq.s32.totalorder %s21, 0
      %p42 = por %p40, %p41
      %p43 = scmp.ne.s32.totalorder %s29, %s30
      %p44 = scmp.eq.s32.totalorder %s22, 1
      %p45 = por %p43, %p44
      %p47 = scmp.ne.s32.totalorder %s30, %s46
      %p48 = scmp.eq.s32.totalorder %s22, 0
      %p49 = por %p47, %p48
      %s51 = sadd.s32 %s50, 1
      %p54 = scmp.eq.s32.totalorder %s16, 1
      %p55 = scmp.ne.s32.totalorder %s50, %s52
      %p56 = scmp.eq.s32.totalorder %s16, 0
      %p57 = por %p55, %p56
      %p58 = scmp.ne.s32.totalorder %s50, %s52
      %p59 = scmp.eq.s32.totalorder %s21, 1
      %p60 = por %p58, %p59
      %p61 = scmp.ne.s32.totalorder %s52, %s53
      %p62 = scmp.eq.s32.totalorder %s21, 0
      %p63 = por %p61, %p62
      %p64 = scmp.ne.s32.totalorder %s52, %s53
      %p65 = scmp.eq.s32.totalorder %s22, 1
      %p66 = por %p64, %p65
      %p68 = scmp.ne.s32.totalorder %s53, %s67
      %p69 = scmp.eq.s32.totalorder %s22, 0
      %p70 = por %p68, %p69
      %s72 = sadd.s32 %s71, 1
      %p75 = scmp.eq.s32.totalorder %s16, 1
      %p76 = scmp.ne.s32.totalorder %s71, %s73
      %p77 = scmp.eq.s32.totalorder %s16, 0
      %p78 = por %p76, %p77
      %p79 = scmp.ne.s32.totalorder %s71, %s73
      %p80 = scmp.eq.s32.totalorder %s21, 1
      %p81 = por %p79, %p80
      %p82 = scmp.ne.s32.totalorder %s73, %s74
      %p83 = scmp.eq.s32.totalorder %s21, 0
      %p84 = por %p82, %p83
      %p85 = scmp.ne.s32.totalorder %s73, %s74
      %p86 = scmp.eq.s32.totalorder %s22, 1
      %p87 = por %p85, %p86
      %p89 = scmp.ne.s32.totalorder %s74, %s88
      %p90 = scmp.eq.s32.totalorder %s22, 0
      %p91 = por %p89, %p90
      %s93 = sadd.s32 %s92, 1
      %p96 = scmp.eq.s32.totalorder %s16, 1
      %p97 = scmp.ne.s32.totalorder %s92, %s94
      %p98 = scmp.eq.s32.totalorder %s16, 0
      %p99 = por %p97, %p98
      %p100 = scmp.ne.s32.totalorder %s92, %s94
      %p101 = scmp.eq.s32.totalorder %s21, 1
      %p102 = por %p100, %p101
      %p103 = scmp.ne.s32.totalorder %s94, %s95
      %p104 = scmp.eq.s32.totalorder %s21, 0
      %p105 = por %p103, %p104
      %p106 = scmp.ne.s32.totalorder %s94, %s95
      %p107 = scmp.eq.s32.totalorder %s22, 1
      %p108 = por %p106, %p107
      %p110 = scmp.ne.s32.totalorder %s95, %s109
      %p111 = scmp.eq.s32.totalorder %s22, 0
      %p112 = por %p110, %p111
      %s114 = sadd.s32 %s113, 1
      %p117 = scmp.eq.s32.totalorder %s16, 1
      %p118 = scmp.ne.s32.totalorder %s113, %s115
      %p119 = scmp.eq.s32.totalorder %s16, 0
      %p120 = por %p118, %p119
      %p121 = scmp.ne.s32.totalorder %s113, %s115
      %p122 = scmp.eq.s32.totalorder %s21, 1
      %p123 = por %p121, %p122
      %p124 = scmp.ne.s32.totalorder %s115, %s116
      %p125 = scmp.eq.s32.totalorder %s21, 0
      %p126 = por %p124, %p125
      %p127 = scmp.ne.s32.totalorder %s115, %s116
      %p128 = scmp.eq.s32.totalorder %s22, 1
      %p129 = por %p127, %p128
      %p131 = scmp.ne.s32.totalorder %s116, %s130
      %p132 = scmp.eq.s32.totalorder %s22, 0
      %p133 = por %p131, %p132
      %s135 = sadd.s32 %s134, 1
      %p138 = scmp.eq.s32.totalorder %s16, 1
      %p139 = scmp.ne.s32.totalorder %s134, %s136
      %p140 = scmp.eq.s32.totalorder %s16, 0
      %p141 = por %p139, %p140
      %p142 = scmp.ne.s32.totalorder %s134, %s136
      %p143 = scmp.eq.s32.totalorder %s21, 1
      %p144 = por %p142, %p143
      %p145 = scmp.ne.s32.totalorder %s136, %s137
      %p146 = scmp.eq.s32.totalorder %s21, 0
      %p147 = por %p145, %p146
      %p148 = scmp.ne.s32.totalorder %s136, %s137
      %p149 = scmp.eq.s32.totalorder %s22, 1
      %p150 = por %p148, %p149
      %p152 = scmp.ne.s32.totalorder %s137, %s151
      %p153 = scmp.eq.s32.totalorder %s22, 0
      %p154 = por %p152, %p153
      %s156 = sadd.s32 %s155, 1
      %p159 = scmp.eq.s32.totalorder %s16, 1
      %p160 = scmp.ne.s32.totalorder %s155, %s157
      %p161 = scmp.eq.s32.totalorder %s16, 0
      %p162 = por %p160, %p161
      %p163 = scmp.ne.s32.totalorder %s155, %s157
      %p164 = scmp.eq.s32.totalorder %s21, 1
      %p165 = por %p163, %p164
      %p166 = scmp.ne.s32.totalorder %s157, %s158
      %p167 = scmp.eq.s32.totalorder %s21, 0
      %p168 = por %p166, %p167
      %p169 = scmp.ne.s32.totalorder %s157, %s158
      %p170 = scmp.eq.s32.totalorder %s22, 1
      %p171 = por %p169, %p170
      %p173 = scmp.ne.s32.totalorder %s158, %s172
      %p174 = scmp.eq.s32.totalorder %s22, 0
      %p175 = por %p173, %p174
      %s176 = ssub.s32 %s16, %s23
      %p177 = scmp.eq.s32.totalorder %s176, 0
      %s179 = sadd.s32 %s178, 1
      %s180 = scalar_select %p177, %s178, %s179
      %p183 = pneg %p177
      %p184 = scmp.eq.s32.totalorder %s16, 1
      %p185 = por %p183, %p184
      %p186 = scmp.ne.s32.totalorder %s178, %s181
      %p187 = scmp.eq.s32.totalorder %s16, 0
      %p188 = por %p186, %p187
      %p189 = scmp.ne.s32.totalorder %s178, %s181
      %p190 = scmp.eq.s32.totalorder %s21, 1
      %p191 = por %p189, %p190
      %p192 = scmp.ne.s32.totalorder %s181, %s182
      %p193 = scmp.eq.s32.totalorder %s21, 0
      %p194 = por %p192, %p193
      %p195 = scmp.ne.s32.totalorder %s181, %s182
      %p196 = scmp.eq.s32.totalorder %s22, 1
      %p197 = por %p195, %p196
      %p199 = scmp.ne.s32.totalorder %s182, %s198
      %p200 = scmp.eq.s32.totalorder %s22, 0
      %p201 = por %p199, %p200
      %p202 = scmp.le.s32.totalorder 1, %s16
      %p203 = scmp.lt.s32.totalorder %s16, 3
      %p204 = pnand %p202, %p203
      %p205 = pneg %p204
      // Predicated region
      $region9: #{tpu_custom_call.1} parent=5 // pred_check
        _
      $region10: #{tpu_custom_call.1} parent=5 // pred_check_branch
        %207 = sbr.rel (%p204) target = $region12
      $region11: #{tpu_custom_call.1} parent=5 // pred_region
        %s208 = ssub.s32 %s16, 1
        // Predicated region
        $region13: #{tpu_custom_call.1} parent=11 // pred_check
          %p209 = pneg %p63
        $region14: #{tpu_custom_call.1} parent=11 // pred_check_branch
          %211 = sbr.rel (%p209) target = $region16
        $region15: #{tpu_custom_call.1} parent=11 // pred_region
          _
        $region16: #{tpu_custom_call.1} parent=11 // pred_fallthru
          _
        // Predicated region
        $region17: #{tpu_custom_call.1} parent=11 // pred_check
          %p212 = pneg %p84
        $region18: #{tpu_custom_call.1} parent=11 // pred_check_branch
          %214 = sbr.rel (%p212) target = $region20
        $region19: #{tpu_custom_call.1} parent=11 // pred_region
          _
        $region20: #{tpu_custom_call.1} parent=11 // pred_fallthru
          _
        // Predicated region
        $region21: #{tpu_custom_call.1} parent=11 // pred_check
          %p215 = pneg %p105
        $region22: #{tpu_custom_call.1} parent=11 // pred_check_branch
          %217 = sbr.rel (%p215) target = $region24
        $region23: #{tpu_custom_call.1} parent=11 // pred_region
          _
        $region24: #{tpu_custom_call.1} parent=11 // pred_fallthru
          _
        // Predicated region
        $region25: #{tpu_custom_call.1} parent=11 // pred_check
          %p218 = pneg %p126
        $region26: #{tpu_custom_call.1} parent=11 // pred_check_branch
          %220 = sbr.rel (%p218) target = $region28
        $region27: #{tpu_custom_call.1} parent=11 // pred_region
          _
        $region28: #{tpu_custom_call.1} parent=11 // pred_fallthru
          _
        // Predicated region
        $region29: #{tpu_custom_call.1} parent=11 // pred_check
          %p221 = pneg %p147
        $region30: #{tpu_custom_call.1} parent=11 // pred_check_branch
          %223 = sbr.rel (%p221) target = $region32
        $region31: #{tpu_custom_call.1} parent=11 // pred_region
          _
        $region32: #{tpu_custom_call.1} parent=11 // pred_fallthru
          _
        // Predicated region
        $region33: #{tpu_custom_call.1} parent=11 // pred_check
          %p224 = pneg %p168
        $region34: #{tpu_custom_call.1} parent=11 // pred_check_branch
          %226 = sbr.rel (%p224) target = $region36
        $region35: #{tpu_custom_call.1} parent=11 // pred_region
          _
        $region36: #{tpu_custom_call.1} parent=11 // pred_fallthru
          _
      $region12: #{tpu_custom_call.1} parent=5 // pred_fallthru
        _
      %p227 = scmp.lt.s32.totalorder %s16, 2
      // Predicated region
      $region37: #{tpu_custom_call.1} parent=5 // pred_check
        %p228 = pneg %p227
      $region38: #{tpu_custom_call.1} parent=5 // pred_check_branch
        %230 = sbr.rel (%p228) target = $region40
      $region39: #{tpu_custom_call.1} parent=5 // pred_region
        // Predicated region
        $region41: #{tpu_custom_call.1} parent=39 // pred_check
          %p231 = pneg %p36
        $region42: #{tpu_custom_call.1} parent=39 // pred_check_branch
          %233 = sbr.rel (%p231) target = $region44
        $region43: #{tpu_custom_call.1} parent=39 // pred_region
          %s234 = smul.u32 16, %s16
          %p235 = scmp.lt.s32.totalorder %s234, 31
          %s236 = scalar_select %p235, %s234, 31
          %s237 = smul.addr %s236, 4
          %s238 = scalar_lea.vmem %s0, %s237
          %s239 = smul.u32 16, %s16
        $region44: #{tpu_custom_call.1} parent=39 // pred_fallthru
          _
      $region40: #{tpu_custom_call.1} parent=5 // pred_fallthru
        _
      %p240 = scmp.le.s32.totalorder 1, %s16
      %p241 = scmp.lt.s32.totalorder %s16, 3
      %p242 = pnand %p240, %p241
      %p243 = pneg %p242
      // Predicated region
      $region45: #{tpu_custom_call.1} parent=5 // pred_check
        _
      $region46: #{tpu_custom_call.1} parent=5 // pred_check_branch
        %245 = sbr.rel (%p242) target = $region48
      $region47: #{tpu_custom_call.1} parent=5 // pred_region
        %s246 = ssub.s32 %s16, 1
        %s247 = smul.u32 16, %s21
        %p248 = scmp.lt.s32.totalorder %s247, 31
        %s249 = scalar_select %p248, %s247, 31
        %s250 = smul.addr %s249, 4
        %s251 = scalar_lea.vmem %s0, %s250
        %p252 = pneg %p42
        %p253 = pneg %p39
        %p254 = pneg %p63
        %p255 = pneg %p60
        %p256 = pneg %p84
        %p257 = pneg %p81
        %p258 = pneg %p105
        %p259 = pneg %p102
        %p260 = pneg %p126
        %p261 = pneg %p123
        %p262 = pneg %p147
        %p263 = pneg %p144
        %p264 = pneg %p168
        %p265 = pneg %p165
        %p266 = pneg %p194
        %p267 = pneg %p191
        %s268 = sand.u32 %s181, 1
        %s269 = scalar_lea.sflag [#allocation3], %s268
        %s270 = sand.u32 %s181, 1
        %s271 = smul.addr %s270, 128
        %s272 = scalar_lea.vmem [#allocation2], %s271
        %s273 = smul.u32 16, %s21
        %p274 = scmp.lt.s32.totalorder %s273, 31
        %s275 = scalar_select %p274, %s273, 31
        %s276 = smul.addr %s275, 4
        %s277 = scalar_lea.vmem %s0, %s276
        %s278 = smul.u32 16, %s21
        %s279 = smul.u32 16, %s21
        %v281 = vld [vmem:[%s277] sm:$0xf]
        %v282 = vld [vmem:[%s277 + $0x4] sm:$0xf]
        %v283 = vld [vmem:[%s277 + $0x8] sm:$0xf]
        %v284 = vld [vmem:[%s277 + $0xc] sm:$0xf]
        %v285 = vld [vmem:[%s277 + $0x10] sm:$0xf]
        %v286 = vld [vmem:[%s277 + $0x14] sm:$0xf]
        %v287 = vld [vmem:[%s277 + $0x18] sm:$0xf]
        %v288 = vld [vmem:[%s277 + $0x1c] sm:$0xf]
        %v289 = vld [vmem:[%s277 + $0x20] sm:$0xf]
        %v290 = vld [vmem:[%s277 + $0x24] sm:$0xf]
        %v291 = vld [vmem:[%s277 + $0x28] sm:$0xf]
        %v292 = vld [vmem:[%s277 + $0x2c] sm:$0xf]
        %v293 = vld [vmem:[%s277 + $0x30] sm:$0xf]
        %v294 = vld [vmem:[%s277 + $0x34] sm:$0xf]
        %v295 = vld [vmem:[%s277 + $0x38] sm:$0xf]
        %v296 = vld [vmem:[%s277 + $0x3c] sm:$0xf]
        %v297 = vld [vmem:[%s1] sm:$0xf]
        %v298 = vld [vmem:[%s1 + $0x4] sm:$0xf]
        %v299 = vld [vmem:[%s1 + $0x8] sm:$0xf]
        %v300 = vld [vmem:[%s1 + $0xc] sm:$0xf]
        %v301 = vld [vmem:[%s1 + $0x10] sm:$0xf]
        %v302 = vld [vmem:[%s1 + $0x14] sm:$0xf]
        %v303 = vld [vmem:[%s1 + $0x18] sm:$0x1]
        %v304 = vld [vmem:[%s2] sm:$0x1]
        %v306 = vlaneseq
        %v307 = vshrl.u32 %v306, 7
        %v308 = vsub.s32 0, %v307
        %v309 = vrot.slane %v304, %v308
        %v327 = vunpack.c.l.b16 %v281
        %v328 = vunpack.c.l.b16 %v282
        %v329 = vunpack.c.l.b16 %v283
        %v330 = vunpack.c.l.b16 %v284
        %v331 = vunpack.c.l.b16 %v285
        %v332 = vunpack.c.l.b16 %v286
        %v333 = vunpack.c.l.b16 %v287
        %v334 = vunpack.c.l.b16 %v288
        %v335 = vunpack.c.l.b16 %v289
        %v336 = vunpack.c.l.b16 %v290
        %v337 = vunpack.c.l.b16 %v291
        %v338 = vunpack.c.l.b16 %v292
        %v339 = vunpack.c.l.b16 %v293
        %v340 = vunpack.c.l.b16 %v294
        %v341 = vunpack.c.l.b16 %v295
        %v342 = vunpack.c.l.b16 %v296
        %v343 = vpack.c.b16 %v328, %v327
        %v344 = vpack.c.b16 %v330, %v329
        %v345 = vpack.c.b16 %v332, %v331
        %v346 = vpack.c.b16 %v334, %v333
        %v347 = vpack.c.b16 %v336, %v335
        %v348 = vpack.c.b16 %v338, %v337
        %v349 = vpack.c.b16 %v340, %v339
        %v350 = vpack.c.b16 %v342, %v341
        %v358 = vunpack.c.l.b16 %v297
        %v359 = vunpack.c.l.b16 %v298
        %v360 = vunpack.c.l.b16 %v299
        %v361 = vunpack.c.l.b16 %v300
        %v362 = vunpack.c.l.b16 %v301
        %v363 = vunpack.c.l.b16 %v302
        %v364 = vunpack.c.l.b16 %v303
        %v365 = vpack.c.b16 %v359, %v358
        %v366 = vpack.c.b16 %v361, %v360
        %v367 = vpack.c.b16 %v363, %v362
        %v368 = vpack.c.b16 %v364, %v364
        %vm372 = vcmask 408576
        %v374 = vsel %vm372, %v343, 0
        %v377 = vsel %vm372, %v344, 0
        %v380 = vsel %vm372, %v345, 0
        %v383 = vsel %vm372, %v346, 0
        %v386 = vsel %vm372, %v347, 0
        %v389 = vsel %vm372, %v348, 0
        %v392 = vsel %vm372, %v349, 0
        %v395 = vsel %vm372, %v350, 0
        %vm397 = vcmask 1040384
        %v399 = vsel %vm397, %v368, 0
        %401 = vmatprep.subr.bf16.mxu0 0
        %402 = vmatpush1.bf16.msra.mxu0 0
        %403 = vmatprep.subr.bf16.mxu0 0
        %404 = vmatpush1.bf16.msra.mxu0 0
        %405 = vmatprep.subr.bf16.mxu0 0
        %406 = vmatpush1.bf16.msra.mxu0 0
        %407 = vmatprep.subr.bf16.mxu0 0
        %408 = vmatpush1.bf16.msra.mxu0 0
        %409 = vmatprep.subr.bf16.mxu0 0
        %410 = vmatpush1.bf16.msra.mxu0 %v399
        %411 = vmatprep.subr.bf16.mxu0 0
        %412 = vmatpush1.bf16.msra.mxu0 %v367
        %413 = vmatprep.subr.bf16.mxu0 0
        %414 = vmatpush1.bf16.msra.mxu0 %v366
        %415 = vmatprep.subr.bf16.mxu0 0
        %416 = vmatpush1.bf16.msra.mxu0 %v365
        %417 = vmatprep.subr.bf16.mxu0 0
        %418 = vmatpush2.bf16.msra.mxu0 0
        %419 = vmatprep.subr.bf16.mxu0 0
        %420 = vmatpush2.bf16.msra.mxu0 0
        %421 = vmatprep.subr.bf16.mxu0 0
        %422 = vmatpush2.bf16.msra.mxu0 0
        %423 = vmatprep.subr.bf16.mxu0 0
        %424 = vmatpush2.bf16.msra.mxu0 0
        %425 = vmatprep.subr.bf16.mxu0 0
        %426 = vmatpush2.bf16.msra.mxu0 0
        %427 = vmatprep.subr.bf16.mxu0 0
        %428 = vmatpush2.bf16.msra.mxu0 0
        %429 = vmatprep.subr.bf16.mxu0 0
        %430 = vmatpush2.bf16.msra.mxu0 0
        %431 = vmatprep.subr.bf16.mxu0 0
        %432 = vmatpush2.bf16.msra.mxu0 0
        %433 = vmatprep.mubr.bf16.mxu0 0
        %434 = vmatmul.mubr.bf16.gmra.mxu0 %v374
        %v435 = vpop.f32.mrf.mxu0
        %v436 = vadd.f32 %v309, %v435
        %v437 = vpop.f32.mrf.mxu0
        %v438 = vpop.f32.mrf.mxu0
        %v439 = vadd.f32 %v309, %v438
        %v440 = vpop.f32.mrf.mxu0
        %441 = vmatprep.mubr.bf16.mxu0 0
        %442 = vmatmul.mubr.bf16.gmra.mxu0 %v377
        %v443 = vpop.f32.mrf.mxu0
        %v444 = vadd.f32 %v309, %v443
        %v445 = vpop.f32.mrf.mxu0
        %v446 = vpop.f32.mrf.mxu0
        %v447 = vadd.f32 %v309, %v446
        %v448 = vpop.f32.mrf.mxu0
        %449 = vmatprep.mubr.bf16.mxu0 0
        %450 = vmatmul.mubr.bf16.gmra.mxu0 %v380
        %v451 = vpop.f32.mrf.mxu0
        %v452 = vadd.f32 %v309, %v451
        %v453 = vpop.f32.mrf.mxu0
        %v454 = vpop.f32.mrf.mxu0
        %v455 = vadd.f32 %v309, %v454
        %v456 = vpop.f32.mrf.mxu0
        %457 = vmatprep.mubr.bf16.mxu0 0
        %458 = vmatmul.mubr.bf16.gmra.mxu0 %v383
        %v459 = vpop.f32.mrf.mxu0
        %v460 = vadd.f32 %v309, %v459
        %v461 = vpop.f32.mrf.mxu0
        %v462 = vpop.f32.mrf.mxu0
        %v463 = vadd.f32 %v309, %v462
        %v464 = vpop.f32.mrf.mxu0
        %465 = vmatprep.mubr.bf16.mxu0 0
        %466 = vmatmul.mubr.bf16.gmra.mxu0 %v386
        %v467 = vpop.f32.mrf.mxu0
        %v468 = vadd.f32 %v309, %v467
        %v469 = vpop.f32.mrf.mxu0
        %v470 = vpop.f32.mrf.mxu0
        %v471 = vadd.f32 %v309, %v470
        %v472 = vpop.f32.mrf.mxu0
        %473 = vmatprep.mubr.bf16.mxu0 0
        %474 = vmatmul.mubr.bf16.gmra.mxu0 %v389
        %v475 = vpop.f32.mrf.mxu0
        %v476 = vadd.f32 %v309, %v475
        %v477 = vpop.f32.mrf.mxu0
        %v478 = vpop.f32.mrf.mxu0
        %v479 = vadd.f32 %v309, %v478
        %v480 = vpop.f32.mrf.mxu0
        %481 = vmatprep.mubr.bf16.mxu0 0
        %482 = vmatmul.mubr.bf16.gmra.mxu0 %v392
        %v483 = vpop.f32.mrf.mxu0
        %v484 = vadd.f32 %v309, %v483
        %v485 = vpop.f32.mrf.mxu0
        %v486 = vpop.f32.mrf.mxu0
        %v487 = vadd.f32 %v309, %v486
        %v488 = vpop.f32.mrf.mxu0
        %489 = vmatprep.mubr.bf16.mxu0 0
        %490 = vmatmul.mubr.bf16.gmra.mxu0 %v395
        %v491 = vpop.f32.mrf.mxu0
        %v492 = vadd.f32 %v309, %v491
        %v493 = vpop.f32.mrf.mxu0
        %v494 = vpop.f32.mrf.mxu0
        %v495 = vadd.f32 %v309, %v494
        %v496 = vpop.f32.mrf.mxu0
        %497 = vdwg.mxu0
        %v498 = vmax.f32 %v436, 0.0
        %v499 = vmax.f32 %v439, 0.0
        %v500 = vmax.f32 %v444, 0.0
        %v501 = vmax.f32 %v447, 0.0
        %v502 = vmax.f32 %v452, 0.0
        %v503 = vmax.f32 %v455, 0.0
        %v504 = vmax.f32 %v460, 0.0
        %v505 = vmax.f32 %v463, 0.0
        %v506 = vmax.f32 %v468, 0.0
        %v507 = vmax.f32 %v471, 0.0
        %v508 = vmax.f32 %v476, 0.0
        %v509 = vmax.f32 %v479, 0.0
        %v510 = vmax.f32 %v484, 0.0
        %v511 = vmax.f32 %v487, 0.0
        %v512 = vmax.f32 %v492, 0.0
        %v513 = vmax.f32 %v495, 0.0
        %v514 = vpack.c.bf16 %v499, %v498
        %v515 = vpack.c.bf16 %v501, %v500
        %v516 = vpack.c.bf16 %v503, %v502
        %v517 = vpack.c.bf16 %v505, %v504
        %v518 = vpack.c.bf16 %v507, %v506
        %v519 = vpack.c.bf16 %v509, %v508
        %v520 = vpack.c.bf16 %v511, %v510
        %v521 = vpack.c.bf16 %v513, %v512
        %v522 = vld [vmem:[%s3] sm:$0xf]
        %v523 = vld [vmem:[%s3 + $0x4] sm:$0xf]
        %v524 = vld [vmem:[%s3 + $0x8] sm:$0xf]
        %v525 = vld [vmem:[%s3 + $0xc] sm:$0xf]
        %v526 = vld [vmem:[%s3 + $0x10] sm:$0xf]
        %v527 = vld [vmem:[%s3 + $0x14] sm:$0xf]
        %v528 = vld [vmem:[%s3 + $0x18] sm:$0xf]
        %v529 = vld [vmem:[%s3 + $0x1c] sm:$0xf]
        %v530 = vld [vmem:[%s3 + $0x20] sm:$0xf]
        %v531 = vld [vmem:[%s4] sm:$0x1]
        %v533 = vlaneseq
        %v534 = vshrl.u32 %v533, 7
        %v535 = vsub.s32 0, %v534
        %v536 = vrot.slane %v531, %v535
        %v547 = vunpack.c.l.b16 %v522
        %v548 = vunpack.c.l.b16 %v523
        %v549 = vunpack.c.l.b16 %v524
        %v550 = vunpack.c.l.b16 %v525
        %v551 = vunpack.c.l.b16 %v526
        %v552 = vunpack.c.l.b16 %v527
        %v553 = vunpack.c.l.b16 %v528
        %v554 = vunpack.c.l.b16 %v529
        %v555 = vunpack.c.l.b16 %v530
        %v556 = vpack.c.b16 %v548, %v547
        %v557 = vpack.c.b16 %v550, %v549
        %v558 = vpack.c.b16 %v552, %v551
        %v559 = vpack.c.b16 %v554, %v553
        %v560 = vpack.c.b16 %v555, %v555
        %vm565 = vcmask 588800
        %v567 = vsel %vm565, %v514, 0
        %v570 = vsel %vm565, %v515, 0
        %v573 = vsel %vm565, %v516, 0
        %v576 = vsel %vm565, %v517, 0
        %v579 = vsel %vm565, %v518, 0
        %v582 = vsel %vm565, %v519, 0
        %v585 = vsel %vm565, %v520, 0
        %v588 = vsel %vm565, %v521, 0
        %vm590 = vcmask 1043456
        %v592 = vsel %vm590, %v560, 0
        %594 = vmatprep.subr.bf16.mxu0 0
        %595 = vmatpush1.bf16.msra.mxu0 0
        %596 = vmatprep.subr.bf16.mxu0 0
        %597 = vmatpush1.bf16.msra.mxu0 0
        %598 = vmatprep.subr.bf16.mxu0 0
        %599 = vmatpush1.bf16.msra.mxu0 0
        %600 = vmatprep.subr.bf16.mxu0 0
        %601 = vmatpush1.bf16.msra.mxu0 %v592
        %602 = vmatprep.subr.bf16.mxu0 0
        %603 = vmatpush1.bf16.msra.mxu0 %v559
        %604 = vmatprep.subr.bf16.mxu0 0
        %605 = vmatpush1.bf16.msra.mxu0 %v558
        %606 = vmatprep.subr.bf16.mxu0 0
        %607 = vmatpush1.bf16.msra.mxu0 %v557
        %608 = vmatprep.subr.bf16.mxu0 0
        %609 = vmatpush1.bf16.msra.mxu0 %v556
        %610 = vmatprep.subr.bf16.mxu0 0
        %611 = vmatpush2.bf16.msra.mxu0 0
        %612 = vmatprep.subr.bf16.mxu0 0
        %613 = vmatpush2.bf16.msra.mxu0 0
        %614 = vmatprep.subr.bf16.mxu0 0
        %615 = vmatpush2.bf16.msra.mxu0 0
        %616 = vmatprep.subr.bf16.mxu0 0
        %617 = vmatpush2.bf16.msra.mxu0 0
        %618 = vmatprep.subr.bf16.mxu0 0
        %619 = vmatpush2.bf16.msra.mxu0 0
        %620 = vmatprep.subr.bf16.mxu0 0
        %621 = vmatpush2.bf16.msra.mxu0 0
        %622 = vmatprep.subr.bf16.mxu0 0
        %623 = vmatpush2.bf16.msra.mxu0 0
        %624 = vmatprep.subr.bf16.mxu0 0
        %625 = vmatpush2.bf16.msra.mxu0 0
        %626 = vmatprep.mubr.bf16.mxu0 0
        %627 = vmatmul.mubr.bf16.gmra.mxu0 %v567
        %v628 = vpop.f32.mrf.mxu0
        %v629 = vadd.f32 %v536, %v628
        %v630 = vpop.f32.mrf.mxu0
        %v631 = vpop.f32.mrf.mxu0
        %v632 = vadd.f32 %v536, %v631
        %v633 = vpop.f32.mrf.mxu0
        %634 = vmatprep.mubr.bf16.mxu0 0
        %635 = vmatmul.mubr.bf16.gmra.mxu0 %v570
        %v636 = vpop.f32.mrf.mxu0
        %v637 = vadd.f32 %v536, %v636
        %v638 = vpop.f32.mrf.mxu0
        %v639 = vpop.f32.mrf.mxu0
        %v640 = vadd.f32 %v536, %v639
        %v641 = vpop.f32.mrf.mxu0
        %642 = vmatprep.mubr.bf16.mxu0 0
        %643 = vmatmul.mubr.bf16.gmra.mxu0 %v573
        %v644 = vpop.f32.mrf.mxu0
        %v645 = vadd.f32 %v536, %v644
        %v646 = vpop.f32.mrf.mxu0
        %v647 = vpop.f32.mrf.mxu0
        %v648 = vadd.f32 %v536, %v647
        %v649 = vpop.f32.mrf.mxu0
        %650 = vmatprep.mubr.bf16.mxu0 0
        %651 = vmatmul.mubr.bf16.gmra.mxu0 %v576
        %v652 = vpop.f32.mrf.mxu0
        %v653 = vadd.f32 %v536, %v652
        %v654 = vpop.f32.mrf.mxu0
        %v655 = vpop.f32.mrf.mxu0
        %v656 = vadd.f32 %v536, %v655
        %v657 = vpop.f32.mrf.mxu0
        %658 = vmatprep.mubr.bf16.mxu0 0
        %659 = vmatmul.mubr.bf16.gmra.mxu0 %v579
        %v660 = vpop.f32.mrf.mxu0
        %v661 = vadd.f32 %v536, %v660
        %v662 = vpop.f32.mrf.mxu0
        %v663 = vpop.f32.mrf.mxu0
        %v664 = vadd.f32 %v536, %v663
        %v665 = vpop.f32.mrf.mxu0
        %666 = vmatprep.mubr.bf16.mxu0 0
        %667 = vmatmul.mubr.bf16.gmra.mxu0 %v582
        %v668 = vpop.f32.mrf.mxu0
        %v669 = vadd.f32 %v536, %v668
        %v670 = vpop.f32.mrf.mxu0
        %v671 = vpop.f32.mrf.mxu0
        %v672 = vadd.f32 %v536, %v671
        %v673 = vpop.f32.mrf.mxu0
        %674 = vmatprep.mubr.bf16.mxu0 0
        %675 = vmatmul.mubr.bf16.gmra.mxu0 %v585
        %v676 = vpop.f32.mrf.mxu0
        %v677 = vadd.f32 %v536, %v676
        %v678 = vpop.f32.mrf.mxu0
        %v679 = vpop.f32.mrf.mxu0
        %v680 = vadd.f32 %v536, %v679
        %v681 = vpop.f32.mrf.mxu0
        %682 = vmatprep.mubr.bf16.mxu0 0
        %683 = vmatmul.mubr.bf16.gmra.mxu0 %v588
        %v684 = vpop.f32.mrf.mxu0
        %v685 = vadd.f32 %v536, %v684
        %v686 = vpop.f32.mrf.mxu0
        %v687 = vpop.f32.mrf.mxu0
        %v688 = vadd.f32 %v536, %v687
        %v689 = vpop.f32.mrf.mxu0
        %690 = vdwg.mxu0
        %v691 = vmax.f32 %v629, 0.0
        %v692 = vmax.f32 %v632, 0.0
        %v693 = vmax.f32 %v637, 0.0
        %v694 = vmax.f32 %v640, 0.0
        %v695 = vmax.f32 %v645, 0.0
        %v696 = vmax.f32 %v648, 0.0
        %v697 = vmax.f32 %v653, 0.0
        %v698 = vmax.f32 %v656, 0.0
        %v699 = vmax.f32 %v661, 0.0
        %v700 = vmax.f32 %v664, 0.0
        %v701 = vmax.f32 %v669, 0.0
        %v702 = vmax.f32 %v672, 0.0
        %v703 = vmax.f32 %v677, 0.0
        %v704 = vmax.f32 %v680, 0.0
        %v705 = vmax.f32 %v685, 0.0
        %v706 = vmax.f32 %v688, 0.0
        %v707 = vpack.c.bf16 %v692, %v691
        %v708 = vpack.c.bf16 %v694, %v693
        %v709 = vpack.c.bf16 %v696, %v695
        %v710 = vpack.c.bf16 %v698, %v697
        %v711 = vpack.c.bf16 %v700, %v699
        %v712 = vpack.c.bf16 %v702, %v701
        %v713 = vpack.c.bf16 %v704, %v703
        %v714 = vpack.c.bf16 %v706, %v705
        %v715 = vld [vmem:[%s5] sm:$0xf]
        %v716 = vld [vmem:[%s5 + $0x4] sm:$0xf]
        %v717 = vld [vmem:[%s5 + $0x8] sm:$0xf]
        %v718 = vld [vmem:[%s5 + $0xc] sm:$0xf]
        %v719 = vld [vmem:[%s5 + $0x10] sm:$0xf]
        %v720 = vld [vmem:[%s5 + $0x14] sm:$0xf]
        %v721 = vld [vmem:[%s5 + $0x18] sm:$0xf]
        %v722 = vld [vmem:[%s5 + $0x1c] sm:$0xf]
        %v723 = vld [vmem:[%s5 + $0x20] sm:$0xf]
        %v724 = vld [vmem:[%s6] sm:$0x1]
        %v726 = vlaneseq
        %v727 = vshrl.u32 %v726, 7
        %v728 = vsub.s32 0, %v727
        %v729 = vrot.slane %v724, %v728
        %v740 = vunpack.c.l.b16 %v715
        %v741 = vunpack.c.l.b16 %v716
        %v742 = vunpack.c.l.b16 %v717
        %v743 = vunpack.c.l.b16 %v718
        %v744 = vunpack.c.l.b16 %v719
        %v745 = vunpack.c.l.b16 %v720
        %v746 = vunpack.c.l.b16 %v721
        %v747 = vunpack.c.l.b16 %v722
        %v748 = vunpack.c.l.b16 %v723
        %v749 = vpack.c.b16 %v741, %v740
        %v750 = vpack.c.b16 %v743, %v742
        %v751 = vpack.c.b16 %v745, %v744
        %v752 = vpack.c.b16 %v747, %v746
        %v753 = vpack.c.b16 %v748, %v748
        %v759 = vsel %vm565, %v707, 0
        %v762 = vsel %vm565, %v708, 0
        %v765 = vsel %vm565, %v709, 0
        %v768 = vsel %vm565, %v710, 0
        %v771 = vsel %vm565, %v711, 0
        %v774 = vsel %vm565, %v712, 0
        %v777 = vsel %vm565, %v713, 0
        %v780 = vsel %vm565, %v714, 0
        %v783 = vsel %vm590, %v753, 0
        %785 = vmatprep.subr.bf16.mxu0 0
        %786 = vmatpush1.bf16.msra.mxu0 0
        %787 = vmatprep.subr.bf16.mxu0 0
        %788 = vmatpush1.bf16.msra.mxu0 0
        %789 = vmatprep.subr.bf16.mxu0 0
        %790 = vmatpush1.bf16.msra.mxu0 0
        %791 = vmatprep.subr.bf16.mxu0 0
        %792 = vmatpush1.bf16.msra.mxu0 %v783
        %793 = vmatprep.subr.bf16.mxu0 0
        %794 = vmatpush1.bf16.msra.mxu0 %v752
        %795 = vmatprep.subr.bf16.mxu0 0
        %796 = vmatpush1.bf16.msra.mxu0 %v751
        %797 = vmatprep.subr.bf16.mxu0 0
        %798 = vmatpush1.bf16.msra.mxu0 %v750
        %799 = vmatprep.subr.bf16.mxu0 0
        %800 = vmatpush1.bf16.msra.mxu0 %v749
        %801 = vmatprep.subr.bf16.mxu0 0
        %802 = vmatpush2.bf16.msra.mxu0 0
        %803 = vmatprep.subr.bf16.mxu0 0
        %804 = vmatpush2.bf16.msra.mxu0 0
        %805 = vmatprep.subr.bf16.mxu0 0
        %806 = vmatpush2.bf16.msra.mxu0 0
        %807 = vmatprep.subr.bf16.mxu0 0
        %808 = vmatpush2.bf16.msra.mxu0 0
        %809 = vmatprep.subr.bf16.mxu0 0
        %810 = vmatpush2.bf16.msra.mxu0 0
        %811 = vmatprep.subr.bf16.mxu0 0
        %812 = vmatpush2.bf16.msra.mxu0 0
        %813 = vmatprep.subr.bf16.mxu0 0
        %814 = vmatpush2.bf16.msra.mxu0 0
        %815 = vmatprep.subr.bf16.mxu0 0
        %816 = vmatpush2.bf16.msra.mxu0 0
        %817 = vmatprep.mubr.bf16.mxu0 0
        %818 = vmatmul.mubr.bf16.gmra.mxu0 %v759
        %v819 = vpop.f32.mrf.mxu0
        %v820 = vadd.f32 %v729, %v819
        %v821 = vpop.f32.mrf.mxu0
        %v822 = vpop.f32.mrf.mxu0
        %v823 = vadd.f32 %v729, %v822
        %v824 = vpop.f32.mrf.mxu0
        %825 = vmatprep.mubr.bf16.mxu0 0
        %826 = vmatmul.mubr.bf16.gmra.mxu0 %v762
        %v827 = vpop.f32.mrf.mxu0
        %v828 = vadd.f32 %v729, %v827
        %v829 = vpop.f32.mrf.mxu0
        %v830 = vpop.f32.mrf.mxu0
        %v831 = vadd.f32 %v729, %v830
        %v832 = vpop.f32.mrf.mxu0
        %833 = vmatprep.mubr.bf16.mxu0 0
        %834 = vmatmul.mubr.bf16.gmra.mxu0 %v765
        %v835 = vpop.f32.mrf.mxu0
        %v836 = vadd.f32 %v729, %v835
        %v837 = vpop.f32.mrf.mxu0
        %v838 = vpop.f32.mrf.mxu0
        %v839 = vadd.f32 %v729, %v838
        %v840 = vpop.f32.mrf.mxu0
        %841 = vmatprep.mubr.bf16.mxu0 0
        %842 = vmatmul.mubr.bf16.gmra.mxu0 %v768
        %v843 = vpop.f32.mrf.mxu0
        %v844 = vadd.f32 %v729, %v843
        %v845 = vpop.f32.mrf.mxu0
        %v846 = vpop.f32.mrf.mxu0
        %v847 = vadd.f32 %v729, %v846
        %v848 = vpop.f32.mrf.mxu0
        %849 = vmatprep.mubr.bf16.mxu0 0
        %850 = vmatmul.mubr.bf16.gmra.mxu0 %v771
        %v851 = vpop.f32.mrf.mxu0
        %v852 = vadd.f32 %v729, %v851
        %v853 = vpop.f32.mrf.mxu0
        %v854 = vpop.f32.mrf.mxu0
        %v855 = vadd.f32 %v729, %v854
        %v856 = vpop.f32.mrf.mxu0
        %857 = vmatprep.mubr.bf16.mxu0 0
        %858 = vmatmul.mubr.bf16.gmra.mxu0 %v774
        %v859 = vpop.f32.mrf.mxu0
        %v860 = vadd.f32 %v729, %v859
        %v861 = vpop.f32.mrf.mxu0
        %v862 = vpop.f32.mrf.mxu0
        %v863 = vadd.f32 %v729, %v862
        %v864 = vpop.f32.mrf.mxu0
        %865 = vmatprep.mubr.bf16.mxu0 0
        %866 = vmatmul.mubr.bf16.gmra.mxu0 %v777
        %v867 = vpop.f32.mrf.mxu0
        %v868 = vadd.f32 %v729, %v867
        %v869 = vpop.f32.mrf.mxu0
        %v870 = vpop.f32.mrf.mxu0
        %v871 = vadd.f32 %v729, %v870
        %v872 = vpop.f32.mrf.mxu0
        %873 = vmatprep.mubr.bf16.mxu0 0
        %874 = vmatmul.mubr.bf16.gmra.mxu0 %v780
        %v875 = vpop.f32.mrf.mxu0
        %v876 = vadd.f32 %v729, %v875
        %v877 = vpop.f32.mrf.mxu0
        %v878 = vpop.f32.mrf.mxu0
        %v879 = vadd.f32 %v729, %v878
        %v880 = vpop.f32.mrf.mxu0
        %881 = vdwg.mxu0
        %882 = vst [vmem:[%s272] sm:$0xff] %v820
        %883 = vst [vmem:[%s272 + $0x8] sm:$0xff] %v823
        %884 = vst [vmem:[%s272 + $0x10] sm:$0xff] %v828
        %885 = vst [vmem:[%s272 + $0x18] sm:$0xff] %v831
        %886 = vst [vmem:[%s272 + $0x20] sm:$0xff] %v836
        %887 = vst [vmem:[%s272 + $0x28] sm:$0xff] %v839
        %888 = vst [vmem:[%s272 + $0x30] sm:$0xff] %v844
        %889 = vst [vmem:[%s272 + $0x38] sm:$0xff] %v847
        %890 = vst [vmem:[%s272 + $0x40] sm:$0xff] %v852
        %891 = vst [vmem:[%s272 + $0x48] sm:$0xff] %v855
        %892 = vst [vmem:[%s272 + $0x50] sm:$0xff] %v860
        %893 = vst [vmem:[%s272 + $0x58] sm:$0xff] %v863
        %894 = vst [vmem:[%s272 + $0x60] sm:$0xff] %v868
        %895 = vst [vmem:[%s272 + $0x68] sm:$0xff] %v871
        %896 = vst [vmem:[%s272 + $0x70] sm:$0xff] %v876
        %897 = vst [vmem:[%s272 + $0x78] sm:$0xff] %v879
        %s898 = sand.u32 %s181, 1
        %s899 = scalar_lea.sflag [#allocation3], %s898
        %s900 = sand.u32 %s181, 1
        %s901 = smul.addr %s900, 128
        %s902 = scalar_lea.vmem [#allocation2], %s901
        // Predicated region
        $region49: #{tpu_custom_call.1} parent=47 // pred_check
          %p903 = pneg %p191
        $region50: #{tpu_custom_call.1} parent=47 // pred_check_branch
          %905 = sbr.rel (%p903) target = $region52
        $region51: #{tpu_custom_call.1} parent=47 // pred_region
          %s906 = smul.u32 16, %s21
          %s908 = ssub.s32 2048, 2048
          %909 = vsyncadd %s899, %s908
          %s910 = smul.addr %s906, 128
          %s911 = scalar_lea.hbm %s7, %s910
          %s912 = sshll.u32 %s902, 4
          %s913 = int_to_ptr.vmem [resolvable:$true] %s912
          %918 = dma.vmem_to_hbm [thread:$0]  %s913, 2048, %s911, %s899, 128, 128, 8
        $region52: #{tpu_custom_call.1} parent=47 // pred_fallthru
          _
      $region48: #{tpu_custom_call.1} parent=5 // pred_fallthru
        _
      %p919 = scmp.le.s32.totalorder 2, %s16
      // Predicated region
      $region53: #{tpu_custom_call.1} parent=5 // pred_check
        %p920 = pneg %p919
      $region54: #{tpu_custom_call.1} parent=5 // pred_check_branch
        %922 = sbr.rel (%p920) target = $region56
      $region55: #{tpu_custom_call.1} parent=5 // pred_region
        %s923 = ssub.s32 %s16, 2
        // Predicated region
        $region57: #{tpu_custom_call.1} parent=55 // pred_check
          %p924 = pneg %p197
        $region58: #{tpu_custom_call.1} parent=55 // pred_check_branch
          %926 = sbr.rel (%p924) target = $region60
        $region59: #{tpu_custom_call.1} parent=55 // pred_region
          %s927 = sand.u32 %s182, 1
          %s928 = scalar_lea.sflag [#allocation3], %s927
          %s929 = sand.u32 %s182, 1
          %s930 = smul.addr %s929, 128
          %s931 = scalar_lea.vmem [#allocation2], %s930
          %932 = dma.done %s928, 2048
        $region60: #{tpu_custom_call.1} parent=55 // pred_fallthru
          _
      $region56: #{tpu_custom_call.1} parent=5 // pred_fallthru
        _
    $region6: #{tpu_custom_call.1} parent=1 // loop_footer
      %s20 = sadd.s32 1, %s16
    $region7: #{tpu_custom_call.1} parent=1 // loop_footer_branch
      %15 = sbr.rel target = $region3
    $region8: #{tpu_custom_call.1} parent=1 // loop_exit
      _
    %933 = vsyncpa [#allocation3], 1
    %s934 = scalar_lea.sflag [#allocation3], 1
    %935 = vsyncpa %s934, 1

</llo_original>
